<compile_context>
chip_gen: v7x
topology: tpu7x:2x2x1
jax: 0.10.0
libtpu: 0.0.40
codegen_flags: <defaults>
</compile_context>

<pallas_src>
import functools
import time

import jax
import jax.numpy as jnp
from jax import lax
from jax.experimental import pallas as pl
from jax.experimental.pallas import tpu as pltpu


_MAX_VMEM_LIMIT = 48 << 20       # safe on v7x (64 MiB physical), generous elsewhere
_CHUNK_TARGET_BYTES = 256 << 10  # per-inner-step compute footprint


def _round_up(x: int, m: int) -> int:
    return ((x + m - 1) // m) * m


# ----------------------------------------------------------------------------
# Kernel 1: standard per-row layout, block = (tn, D).
# ----------------------------------------------------------------------------
def _finite_rows_kernel(x_ref, out_ref, *, tn: int, chunk: int, n_rows: int,
                        mask_tail: bool):
    i = pl.program_id(0)

    def body(c, acc):
        start = pl.multiple_of(c * chunk, chunk)
        x = x_ref[pl.ds(start, chunk), :]                       # (chunk, D)
        bad = jnp.sum((~jnp.isfinite(x)).astype(jnp.float32),
                      axis=-1, keepdims=True)                   # (chunk, 1)
        ok = bad == 0.0
        if mask_tail:
            row = (lax.broadcasted_iota(jnp.int32, (chunk, 1), 0)
                   + i * tn + start)
            ok = ok & (row < n_rows)
        return acc + jnp.sum(ok.astype(jnp.int32))

    cnt = lax.fori_loop(0, tn // chunk, body, jnp.int32(0))
    out_ref[...] = jnp.broadcast_to(cnt, out_ref.shape)


# ----------------------------------------------------------------------------
# Kernel 2: lane-dense layout for small D (D | 128).  The input has been
# reshaped to (N*D/128, 128); each 128-lane row packs g = 128//D consecutive
# logical rows.  Per-group non-finite counts come from an MXU selector matmul
# (segmented lane reduce), which is free filler under the HBM DMA.
# ----------------------------------------------------------------------------
def _finite_subrows_kernel(x_ref, out_ref, *, tn: int, chunk: int, n_rows: int,
                           d: int, g: int, mask_tail: bool):
    i = pl.program_id(0)

    # Hoisted once per grid step: sel[l, c] = 1 iff lane l belongs to group c.
    lane = lax.broadcasted_iota(jnp.int32, (128, 128), 0)
    col = lax.broadcasted_iota(jnp.int32, (128, 128), 1)
    sel = ((lane >= col * d) & (lane < (col + 1) * d)).astype(jnp.float32)
    col_valid = lax.broadcasted_iota(jnp.int32, (chunk, 128), 1) < g

    def body(c, acc):
        start = pl.multiple_of(c * chunk, chunk)
        x = x_ref[pl.ds(start, chunk), :]                       # (chunk, 128)
        nonfin = (~jnp.isfinite(x)).astype(jnp.float32)
        bad = jnp.dot(nonfin, sel,
                      preferred_element_type=jnp.float32)       # (chunk, 128)
        ok = (bad == 0.0) & col_valid
        if mask_tail:
            vrow = (lax.broadcasted_iota(jnp.int32, (chunk, 128), 0)
                    + i * tn + start)
            ok = ok & (vrow < n_rows)
        return acc + jnp.sum(ok.astype(jnp.int32))

    cnt = lax.fori_loop(0, tn // chunk, body, jnp.int32(0))
    out_ref[...] = jnp.broadcast_to(cnt, out_ref.shape)


# ----------------------------------------------------------------------------
# Wrapper.
# ----------------------------------------------------------------------------
def count_all_finite_rows(
    samples: jax.Array,
    *,
    target_block_bytes: int = 16 << 20,   # lane-padded input per grid step
    min_pallas_bytes: int = 4 << 20,      # below this, XLA's fused reduce wins
    force_pallas: bool = False,
) -> jax.Array:
    """Pallas equivalent of `samples.isfinite().all(dim=-1).sum()` (int32)."""
    assert samples.ndim == 2, "expected (num_samples, event_dim)"
    n, d = samples.shape
    itemsize = samples.dtype.itemsize
    total_bytes = n * d * itemsize

    def _jnp_fallback():
        return jnp.sum(jnp.all(jnp.isfinite(samples), axis=-1)).astype(jnp.int32)

    if (not force_pallas) and total_bytes < min_pallas_bytes:
        # Pure streaming reduce: XLA already runs this near the HBM roofline
        # (and may fuse with the producer) without pallas_call overhead.
        return _jnp_fallback()

    # ---- layout selection --------------------------------------------------
    if d < 128 and 128 % d == 0 and (n * d) % 128 == 0:
        # Lane-dense view: every vreg lane carries useful data (key on v7x).
        g = 128 // d
        x2d = samples.reshape((n * d) // 128, 128)
        rows, width = x2d.shape
        def make_kernel(tn, chunk, mask_tail):
            return functools.partial(_finite_subrows_kernel, tn=tn, chunk=chunk,
                                     n_rows=rows, d=d, g=g, mask_tail=mask_tail)
    else:
        x2d = samples
        rows, width = n, d
        def make_kernel(tn, chunk, mask_tail):
            return functools.partial(_finite_rows_kernel, tn=tn, chunk=chunk,
                                     n_rows=rows, mask_tail=mask_tail)

    # ---- tiling from the lane/sublane-padded footprint ----------------------
    sub = max(8, 8 * (4 // itemsize))          # sublane packing (8/16/32 rows)
    width_pad = _round_up(width, 128)          # lane padding of the last dim
    row_bytes = width_pad * itemsize           # true in-VMEM bytes per row

    if 2 * sub * row_bytes > _MAX_VMEM_LIMIT // 2:
        # TODO(synk): a D-tiled 2-D grid would handle pathologically wide rows
        # in-kernel; fall back to XLA's fused reduction (HBM-bound anyway).
        return _jnp_fallback()

    # Inner compute chunk (bounds intermediates), multiple of the sublane pack.
    chunk = max(sub, ((_CHUNK_TARGET_BYTES // row_bytes) // sub) * sub)
    # Outer DMA block, multiple of the chunk.
    budget_rows = max(chunk, ((target_block_bytes // row_bytes) // chunk) * chunk)
    tn = min(budget_rows, _round_up(rows, chunk))
    nb = pl.cdiv(rows, tn)
    if nb > 1:
        # Best-effort even block count so v7x's two TensorCores split evenly.
        nb_even = _round_up(nb, 2)
        tn = max(chunk, _round_up(pl.cdiv(rows, nb_even), chunk))
        nb = pl.cdiv(rows, tn)
    mask_tail = (rows % tn) != 0

    block_bytes = tn * row_bytes
    vmem_limit = int(min(_MAX_VMEM_LIMIT,
                         max(32 << 20, 2 * block_bytes + (8 << 20))))

    kernel = make_kernel(tn, chunk, mask_tail)
    partials = pl.pallas_call(
        kernel,
        out_shape=jax.ShapeDtypeStruct((nb, 8, 128), jnp.int32),
        grid_spec=pltpu.PrefetchScalarGridSpec(
            num_scalar_prefetch=0,
            grid=(nb,),
            in_specs=[pl.BlockSpec((tn, width), lambda i: (i, 0))],
            out_specs=pl.BlockSpec((1, 8, 128), lambda i: (i, 0, 0)),
        ),
        compiler_params=pltpu.CompilerParams(
            dimension_semantics=("parallel",),
            vmem_limit_bytes=vmem_limit,
        ),
    )(x2d)
    return jnp.sum(partials[:, 0, 0]).astype(jnp.int32)


# ----------------------------------------------------------------------------
# Minimal JAX-side mirror of the Solver.forward() control flow.
# ----------------------------------------------------------------------------
class Results:
    def __init__(self, samples):
        self.samples = samples
        self.metrics = {}
        self.plots = {}


class PallasSolver:
    """Mirror of sde_sampler.solver.base.Solver's forward-pass semantics.

    # TODO(synk): cfg/OmegaConf handling, torch/np seeding, wandb init,
    # checkpoint load/store, plotting and metrics-file I/O have no Pallas
    # equivalent and are intentionally omitted.
    """

    def __init__(self):
        self.initialized = False
        self.initial_time = time.time()

    def setup(self):
        # TODO(synk): target.compute_stats() / load_checkpoint() are host-side.
        self.initialized = True

    def run(self):
        # Base class is abstract; faithful to the source (returns the class).
        return NotImplementedError

    def get_metrics_and_plots(self, results: Results):
        metrics = dict(results.metrics)
        plots = dict(results.plots)
        metrics["eval/overall_time"] = time.time() - self.initial_time
        if results.samples is not None:
            # Faithful to source precedence:
            #   nonfinite = ~ samples.isfinite().all(dim=-1).sum()
            # i.e. bitwise NOT of the finite-row COUNT (an upstream quirk);
            # it is NOT a count of non-finite rows.
            finite_count = count_all_finite_rows(results.samples)
            nonfinite = ~finite_count
            metrics["eval/finite_row_count"] = int(finite_count)
            metrics["eval/nonfinite_flag"] = int(nonfinite)
            # TODO(synk): get_plots / get_metrics / target.metrics depend on
            # the instantiated target Distribution and matplotlib.
        return metrics, plots

    def log(self, results: Results):
        metrics, _plots = self.get_metrics_and_plots(results)
        # TODO(synk): save_fig / metrics.jsonl append / wandb.log omitted.
        return metrics

    def forward(self, samples: jax.Array):
        if not self.initialized:
            self.setup()
        results = self.run()
        if results is NotImplementedError:
            # Base-class run() is abstract; use the externally provided samples
            # so the (only) tensor path in forward() is exercised.
            results = Results(samples)
        metrics = self.log(results)
        return results, metrics


# ----------------------------------------------------------------------------
# Demo / correctness checks.
# ----------------------------------------------------------------------------
if __name__ == "__main__":
    key = jax.random.PRNGKey(0)

    # Small shape consistent with the module: N samples x D event dims.
    N, D = 64, 32
    samples = jax.random.normal(key, (N, D), dtype=jnp.float32)
    samples = samples.at[3, 5].set(jnp.nan)
    samples = samples.at[17, 0].set(jnp.inf)

    # Forward pass (small input takes the fused-jnp fast path).
    solver = PallasSolver()
    results, metrics = solver.forward(samples)
    assert metrics["eval/finite_row_count"] == N - 2
    assert metrics["eval/nonfinite_flag"] == ~(N - 2)

    def _check(x, **kw):
        got = count_all_finite_rows(x, force_pallas=True, **kw)
        jax.block_until_ready(got)
        ref = jnp.sum(jnp.all(jnp.isfinite(x), axis=-1)).astype(jnp.int32)
        assert int(got) == int(ref), (int(got), int(ref), x.shape, kw)
        return int(got)

    # 1) Lane-dense flattened path (D=32 divides 128), single block, tail mask.
    assert _check(samples) == N - 2

    # 2) Lane-dense path: multiple parallel blocks + ragged flattened tail.
    N2, D2 = 8196, 32
    big = jax.random.normal(jax.random.PRNGKey(0), (N2, D2), dtype=jnp.float32)
    big = big.at[0, 0].set(jnp.inf)
    big = big.at[5000, 7].set(jnp.nan)
    big = big.at[8195, 31].set(-jnp.inf)
    assert _check(big, target_block_bytes=256 << 10) == N2 - 3

    # 3) Standard per-row path: D >= 128, ragged N, multiple blocks.
    N3, D3 = 2053, 256
    x3 = jax.random.normal(jax.random.PRNGKey(0), (N3, D3), dtype=jnp.float32)
    x3 = x3.at[1000, 100].set(jnp.nan)
    x3 = x3.at[2050, 3].set(-jnp.inf)
    assert _check(x3, target_block_bytes=1 << 20) == N3 - 2

    # 4) Standard path with D not a multiple of 128 (lane padding masked by
    #    the in-kernel reduction) and multiple inner chunks.
    N4, D4 = 264, 200
    x4 = jax.random.normal(jax.random.PRNGKey(0), (N4, D4), dtype=jnp.float32)
    x4 = x4.at[13, 199].set(jnp.nan)
    assert _check(x4) == N4 - 1

    # 5) Standard path, small D that does not divide 128.
    N5, D5 = 304, 40
    x5 = jax.random.normal(jax.random.PRNGKey(0), (N5, D5), dtype=jnp.float32)
    x5 = x5.at[0, 0].set(jnp.inf)
    assert _check(x5) == N5 - 1

    print("KERNEL_OK")
</pallas_src>

<mosaic_0001>
module attributes {stable_mosaic.version = 11 : i64} {
  func.func @_finite_subrows_kernel(%arg0: i32, %arg1: memref<512x128xf32, #tpu.memory_space<vmem>>, %arg2: memref<1x8x128xi32, #tpu.memory_space<vmem>>) attributes {dimension_semantics = [#tpu.dimension_semantics<parallel>], iteration_bounds = array<i64: 1>, scalar_prefetch = 0 : i64, scratch_operands = 0 : i64, tpu.core_type = #tpu.core_type<tc>, window_params = [{transform_indices = @transform_0, window_bounds = array<i64: 512, 128>}, {transform_indices = @transform_1, window_bounds = array<i64: 1, 8, 128>}]} {
    %0 = tpu.iota {dimensions = array<i32: 0>} : vector<128x128xi32>
    %1 = tpu.iota {dimensions = array<i32: 1>} : vector<128x128xi32>
    %c32_i32 = arith.constant 32 : i32
    %2 = vector.broadcast %c32_i32 : i32 to vector<128x128xi32>
    %3 = arith.muli %1, %2 : vector<128x128xi32>
    %4 = arith.cmpi sge, %0, %3 : vector<128x128xi32>
    %c1_i32 = arith.constant 1 : i32
    %5 = vector.broadcast %c1_i32 : i32 to vector<128x128xi32>
    %6 = arith.addi %1, %5 : vector<128x128xi32>
    %c32_i32_0 = arith.constant 32 : i32
    %7 = vector.broadcast %c32_i32_0 : i32 to vector<128x128xi32>
    %8 = arith.muli %6, %7 : vector<128x128xi32>
    %9 = arith.cmpi slt, %0, %8 : vector<128x128xi32>
    %10 = arith.andi %4, %9 : vector<128x128xi1>
    %11 = arith.extui %10 : vector<128x128xi1> to vector<128x128xi32>
    %12 = arith.sitofp %11 : vector<128x128xi32> to vector<128x128xf32>
    %13 = tpu.iota {dimensions = array<i32: 1>} : vector<512x128xi32>
    %c4_i32 = arith.constant 4 : i32
    %14 = vector.broadcast %c4_i32 : i32 to vector<512x128xi32>
    %15 = arith.cmpi slt, %13, %14 : vector<512x128xi32>
    %c0_i32 = arith.constant 0 : i32
    %c0_i32_1 = arith.constant 0 : i32
    %c512_i32 = arith.constant 512 : i32
    %16 = arith.muli %c0_i32_1, %c512_i32 : i32
    %17 = tpu.assume_multiple %16, 512 : i32
    %18 = arith.index_cast %17 : i32 to index
    %c0 = arith.constant 0 : index
    %19 = vector.load %arg1[%18, %c0] : memref<512x128xf32, #tpu.memory_space<vmem>>, vector<512x128xf32>
    %20 = tpu.weird %19 : vector<512x128xf32> -> vector<512x128xi1>
    %cst = arith.constant dense<true> : vector<512x128xi1>
    %21 = arith.xori %20, %cst : vector<512x128xi1>
    %cst_2 = arith.constant dense<true> : vector<512x128xi1>
    %22 = arith.xori %21, %cst_2 : vector<512x128xi1>
    %23 = arith.extui %22 : vector<512x128xi1> to vector<512x128xi32>
    %24 = arith.sitofp %23 : vector<512x128xi32> to vector<512x128xf32>
    %cst_3 = arith.constant dense<0.000000e+00> : vector<512x128xf32>
    %25 = tpu.matmul %24, %12, %cst_3 {dimension_numbers = #tpu.dot_dimension_numbers<[1], [0], [0], [1], [0, 0, 1, 1], [], []>} : vector<512x128xf32>, vector<128x128xf32>, vector<512x128xf32> -> vector<512x128xf32>
    %cst_4 = arith.constant 0.000000e+00 : f32
    %26 = vector.broadcast %cst_4 : f32 to vector<512x128xf32>
    %27 = arith.cmpf oeq, %25, %26 : vector<512x128xf32>
    %28 = arith.andi %27, %15 : vector<512x128xi1>
    %29 = tpu.iota {dimensions = array<i32: 0>} : vector<512x128xi32>
    %c512_i32_5 = arith.constant 512 : i32
    %30 = arith.muli %arg0, %c512_i32_5 : i32
    %31 = vector.broadcast %30 : i32 to vector<512x128xi32>
    %32 = arith.addi %29, %31 : vector<512x128xi32>
    %33 = vector.broadcast %17 : i32 to vector<512x128xi32>
    %34 = arith.addi %32, %33 : vector<512x128xi32>
    %c16_i32 = arith.constant 16 : i32
    %35 = vector.broadcast %c16_i32 : i32 to vector<512x128xi32>
    %36 = arith.cmpi slt, %34, %35 : vector<512x128xi32>
    %37 = arith.andi %28, %36 : vector<512x128xi1>
    %38 = arith.extui %37 : vector<512x128xi1> to vector<512x128xi32>
    %39 = vector.shape_cast %38 : vector<512x128xi32> to vector<1x512x128xi32>
    %cst_6 = arith.constant dense<0> : vector<1xi32>
    %40 = vector.multi_reduction <add>, %39, %cst_6 [1, 2] : vector<1x512x128xi32> to vector<1xi32>
    %41 = vector.shape_cast %40 : vector<1xi32> to vector<1x1x1xi32>
    %42 = vector.extract %41[0, 0, 0] : i32 from vector<1x1x1xi32>
    %43 = arith.addi %c0_i32, %42 : i32
    %c1_i32_7 = arith.constant 1 : i32
    %44 = vector.broadcast %43 : i32 to vector<1x8x128xi32>
    %c0_8 = arith.constant 0 : index
    %c0_9 = arith.constant 0 : index
    %c0_10 = arith.constant 0 : index
    %45 = vector.load %arg2[%c0_8, %c0_9, %c0_10] : memref<1x8x128xi32, #tpu.memory_space<vmem>>, vector<1x8x128xi32>
    tpu.vector_store %arg2[%c0_8, %c0_9, %c0_10], %44 {strides = array<i32>} : memref<1x8x128xi32, #tpu.memory_space<vmem>>, vector<1x8x128xi32>,
    return
  }
  func.func @transform_0(%arg0: i32) -> (i32, i32) {
    %c0_i32 = arith.constant 0 : i32
    %c0_i32_0 = arith.constant 0 : i32
    return %arg0, %c0_i32 : i32, i32
  }
  func.func @transform_1(%arg0: i32) -> (i32, i32, i32) {
    %c0_i32 = arith.constant 0 : i32
    %c0_i32_0 = arith.constant 0 : i32
    %c0_i32_1 = arith.constant 0 : i32
    return %arg0, %c0_i32, %c0_i32_0 : i32, i32, i32
  }
}

</mosaic_0001>

<llo_original>
// kernel: tpu_custom_call.1
$region0: #{tpu_custom_call.1}
  #allocation0 [shape = 'u32[]', space=smem, size = 0x4, offset = 0x4, fixed_abs, tag = 'smem constant byte address 0x4 - core index']
  #allocation1 [shape = 'u32[144,128]{1,0:T(1,128)}', space=vmem, size = 0x12000, scoped, tag = 'internal scratch']
  %s0 = inlined_call_operand.hbm [shape: f32[16,128], index: 0, kind: input, shape index: {}]
  %s1 = inlined_call_operand.hbm [shape: s32[1,8,128], index: 1, kind: output, shape index: {}]
  %s2 = sld [smem:[#allocation0]]
  $region18: #{tpu_custom_call.1} parent=0
    _
  %s4 = ssub.s32 1, %s2
  %s5 = scalar_select 0, %s4, %s2
  $region1: #{tpu_custom_call.1} parent=0
    #allocation2 [shape = 'u8[262144]{0}', space=vmem, size = 0x40000, scoped, tag = 'input window, operand 0, single buffered']
    #allocation3 [shape = 's32[1]{0}', space=sflag, size = 0x4, scoped, tag = 'scoped memory for tpu_custom_call.1']
    #allocation4 [shape = 's32[1]{0}', space=sflag, size = 0x4, scoped, tag = 'scoped memory for tpu_custom_call.1']
    #allocation5 [shape = 'u8[4096]{0}', space=vmem, size = 0x1000, scoped, tag = 'output window, operand 0, single buffered']
    %6 = vsyncpa [#allocation3], 0
    %7 = vsyncpa [#allocation4], 0
    // Predicated region
    $region2: #{tpu_custom_call.1} parent=1 // pred_check
      _
    $region3: #{tpu_custom_call.1} parent=1 // pred_check_branch
      %9 = sbr.rel (0) target = $region5
    $region4: #{tpu_custom_call.1} parent=1 // pred_region
      %s11 = ssub.s32 8192, 256
      %12 = vsyncadd [#allocation3], %s11
      %s13 = sshll.u32 [#allocation2], 4
      %s14 = int_to_ptr.vmem [resolvable:$true] %s13
      %19 = dma.hbm_to_vmem [thread:$0]  %s0, 256, %s14, [#allocation3], 128, 128, 8
    $region5: #{tpu_custom_call.1} parent=1 // pred_fallthru
      _
    // Predicated region
    $region6: #{tpu_custom_call.1} parent=1 // pred_check
      _
    $region7: #{tpu_custom_call.1} parent=1 // pred_check_branch
      %21 = sbr.rel (0) target = $region9
    $region8: #{tpu_custom_call.1} parent=1 // pred_region
      %22 = dma.done [#allocation3], 8192
    $region9: #{tpu_custom_call.1} parent=1 // pred_fallthru
      _
    %v23 = vlaneseq
    %v24 = vshrl.u32 %v23, 7
    %v25 = vadd.s32 %v24, 8
    %v26 = vadd.s32 %v24, 16
    %v27 = vadd.s32 %v24, 24
    %v28 = vadd.s32 %v24, 32
    %v29 = vadd.s32 %v24, 40
    %v30 = vadd.s32 %v24, 48
    %v31 = vadd.s32 %v24, 56
    %v32 = vadd.s32 %v24, 64
    %v33 = vadd.s32 %v24, 72
    %v34 = vadd.s32 %v24, 80
    %v35 = vadd.s32 %v24, 88
    %v36 = vadd.s32 %v24, 96
    %v37 = vadd.s32 %v24, 104
    %v38 = vadd.s32 %v24, 112
    %v39 = vadd.s32 %v24, 120
    %v40 = vlaneseq
    %v41 = vand.u32 %v40, 127
    %v42 = vmul.u32 %v41, 32
    %vm43 = vcmp.ge.s32.totalorder %v24, %v42
    %vm44 = vcmp.ge.s32.totalorder %v25, %v42
    %vm45 = vcmp.ge.s32.totalorder %v26, %v42
    %vm46 = vcmp.ge.s32.totalorder %v27, %v42
    %vm47 = vcmp.ge.s32.totalorder %v28, %v42
    %vm48 = vcmp.ge.s32.totalorder %v29, %v42
    %vm49 = vcmp.ge.s32.totalorder %v30, %v42
    %vm50 = vcmp.ge.s32.totalorder %v31, %v42
    %vm51 = vcmp.ge.s32.totalorder %v32, %v42
    %vm52 = vcmp.ge.s32.totalorder %v33, %v42
    %vm53 = vcmp.ge.s32.totalorder %v34, %v42
    %vm54 = vcmp.ge.s32.totalorder %v35, %v42
    %vm55 = vcmp.ge.s32.totalorder %v36, %v42
    %vm56 = vcmp.ge.s32.totalorder %v37, %v42
    %vm57 = vcmp.ge.s32.totalorder %v38, %v42
    %vm58 = vcmp.ge.s32.totalorder %v39, %v42
    %v59 = vadd.s32 %v41, 1
    %v60 = vmul.u32 %v59, 32
    %vm61 = vcmp.lt.s32.totalorder %v24, %v60
    %vm62 = vcmp.lt.s32.totalorder %v25, %v60
    %vm63 = vcmp.lt.s32.totalorder %v26, %v60
    %vm64 = vcmp.lt.s32.totalorder %v27, %v60
    %vm65 = vcmp.lt.s32.totalorder %v28, %v60
    %vm66 = vcmp.lt.s32.totalorder %v29, %v60
    %vm67 = vcmp.lt.s32.totalorder %v30, %v60
    %vm68 = vcmp.lt.s32.totalorder %v31, %v60
    %vm69 = vcmp.lt.s32.totalorder %v32, %v60
    %vm70 = vcmp.lt.s32.totalorder %v33, %v60
    %vm71 = vcmp.lt.s32.totalorder %v34, %v60
    %vm72 = vcmp.lt.s32.totalorder %v35, %v60
    %vm73 = vcmp.lt.s32.totalorder %v36, %v60
    %vm74 = vcmp.lt.s32.totalorder %v37, %v60
    %vm75 = vcmp.lt.s32.totalorder %v38, %v60
    %vm76 = vcmp.lt.s32.totalorder %v39, %v60
    %vm77 = vmand %vm43, %vm61
    %vm78 = vmand %vm44, %vm62
    %vm79 = vmand %vm45, %vm63
    %vm80 = vmand %vm46, %vm64
    %vm81 = vmand %vm47, %vm65
    %vm82 = vmand %vm48, %vm66
    %vm83 = vmand %vm49, %vm67
    %vm84 = vmand %vm50, %vm68
    %vm85 = vmand %vm51, %vm69
    %vm86 = vmand %vm52, %vm70
    %vm87 = vmand %vm53, %vm71
    %vm88 = vmand %vm54, %vm72
    %vm89 = vmand %vm55, %vm73
    %vm90 = vmand %vm56, %vm74
    %vm91 = vmand %vm57, %vm75
    %vm92 = vmand %vm58, %vm76
    %v93 = vsel %vm77, 1, 0
    %v94 = vsel %vm78, 1, 0
    %v95 = vsel %vm79, 1, 0
    %v96 = vsel %vm80, 1, 0
    %v97 = vsel %vm81, 1, 0
    %v98 = vsel %vm82, 1, 0
    %v99 = vsel %vm83, 1, 0
    %v100 = vsel %vm84, 1, 0
    %v101 = vsel %vm85, 1, 0
    %v102 = vsel %vm86, 1, 0
    %v103 = vsel %vm87, 1, 0
    %v104 = vsel %vm88, 1, 0
    %v105 = vsel %vm89, 1, 0
    %v106 = vsel %vm90, 1, 0
    %v107 = vsel %vm91, 1, 0
    %v108 = vsel %vm92, 1, 0
    %v109 = vcvt.s32.f32 %v93
    %v110 = vcvt.s32.f32 %v94
    %v111 = vcvt.s32.f32 %v95
    %v112 = vcvt.s32.f32 %v96
    %v113 = vcvt.s32.f32 %v97
    %v114 = vcvt.s32.f32 %v98
    %v115 = vcvt.s32.f32 %v99
    %v116 = vcvt.s32.f32 %v100
    %v117 = vcvt.s32.f32 %v101
    %v118 = vcvt.s32.f32 %v102
    %v119 = vcvt.s32.f32 %v103
    %v120 = vcvt.s32.f32 %v104
    %v121 = vcvt.s32.f32 %v105
    %v122 = vcvt.s32.f32 %v106
    %v123 = vcvt.s32.f32 %v107
    %v124 = vcvt.s32.f32 %v108
    %vm125 = vcmp.lt.s32.totalorder %v41, 4
    %v126 = vld [vmem:[#allocation2] sm:$0xff]
    %v127 = vld [vmem:[#allocation2 + $0x8] sm:$0xff]
    %v128 = vld [vmem:[#allocation2 + $0x10] sm:$0xff]
    %v129 = vld [vmem:[#allocation2 + $0x18] sm:$0xff]
    %v130 = vld [vmem:[#allocation2 + $0x20] sm:$0xff]
    %v131 = vld [vmem:[#allocation2 + $0x28] sm:$0xff]
    %v132 = vld [vmem:[#allocation2 + $0x30] sm:$0xff]
    %v133 = vld [vmem:[#allocation2 + $0x38] sm:$0xff]
    %v134 = vld [vmem:[#allocation2 + $0x40] sm:$0xff]
    %v135 = vld [vmem:[#allocation2 + $0x48] sm:$0xff]
    %v136 = vld [vmem:[#allocation2 + $0x50] sm:$0xff]
    %v137 = vld [vmem:[#allocation2 + $0x58] sm:$0xff]
    %v138 = vld [vmem:[#allocation2 + $0x60] sm:$0xff]
    %v139 = vld [vmem:[#allocation2 + $0x68] sm:$0xff]
    %v140 = vld [vmem:[#allocation2 + $0x70] sm:$0xff]
    %v141 = vld [vmem:[#allocation2 + $0x78] sm:$0xff]
    %v142 = vld [vmem:[#allocation2 + $0x80] sm:$0xff]
    %v143 = vld [vmem:[#allocation2 + $0x88] sm:$0xff]
    %v144 = vld [vmem:[#allocation2 + $0x90] sm:$0xff]
    %v145 = vld [vmem:[#allocation2 + $0x98] sm:$0xff]
    %v146 = vld [vmem:[#allocation2 + $0xa0] sm:$0xff]
    %v147 = vld [vmem:[#allocation2 + $0xa8] sm:$0xff]
    %v148 = vld [vmem:[#allocation2 + $0xb0] sm:$0xff]
    %v149 = vld [vmem:[#allocation2 + $0xb8] sm:$0xff]
    %v150 = vld [vmem:[#allocation2 + $0xc0] sm:$0xff]
    %v151 = vld [vmem:[#allocation2 + $0xc8] sm:$0xff]
    %v152 = vld [vmem:[#allocation2 + $0xd0] sm:$0xff]
    %v153 = vld [vmem:[#allocation2 + $0xd8] sm:$0xff]
    %v154 = vld [vmem:[#allocation2 + $0xe0] sm:$0xff]
    %v155 = vld [vmem:[#allocation2 + $0xe8] sm:$0xff]
    %v156 = vld [vmem:[#allocation2 + $0xf0] sm:$0xff]
    %v157 = vld [vmem:[#allocation2 + $0xf8] sm:$0xff]
    %v158 = vld [vmem:[#allocation2 + $0x100] sm:$0xff]
    %v159 = vld [vmem:[#allocation2 + $0x108] sm:$0xff]
    %v160 = vld [vmem:[#allocation2 + $0x110] sm:$0xff]
    %v161 = vld [vmem:[#allocation2 + $0x118] sm:$0xff]
    %v162 = vld [vmem:[#allocation2 + $0x120] sm:$0xff]
    %v163 = vld [vmem:[#allocation2 + $0x128] sm:$0xff]
    %v164 = vld [vmem:[#allocation2 + $0x130] sm:$0xff]
    %v165 = vld [vmem:[#allocation2 + $0x138] sm:$0xff]
    %v166 = vld [vmem:[#allocation2 + $0x140] sm:$0xff]
    %v167 = vld [vmem:[#allocation2 + $0x148] sm:$0xff]
    %v168 = vld [vmem:[#allocation2 + $0x150] sm:$0xff]
    %v169 = vld [vmem:[#allocation2 + $0x158] sm:$0xff]
    %v170 = vld [vmem:[#allocation2 + $0x160] sm:$0xff]
    %v171 = vld [vmem:[#allocation2 + $0x168] sm:$0xff]
    %v172 = vld [vmem:[#allocation2 + $0x170] sm:$0xff]
    %v173 = vld [vmem:[#allocation2 + $0x178] sm:$0xff]
    %v174 = vld [vmem:[#allocation2 + $0x180] sm:$0xff]
    %v175 = vld [vmem:[#allocation2 + $0x188] sm:$0xff]
    %v176 = vld [vmem:[#allocation2 + $0x190] sm:$0xff]
    %v177 = vld [vmem:[#allocation2 + $0x198] sm:$0xff]
    %v178 = vld [vmem:[#allocation2 + $0x1a0] sm:$0xff]
    %v179 = vld [vmem:[#allocation2 + $0x1a8] sm:$0xff]
    %v180 = vld [vmem:[#allocation2 + $0x1b0] sm:$0xff]
    %v181 = vld [vmem:[#allocation2 + $0x1b8] sm:$0xff]
    %v182 = vld [vmem:[#allocation2 + $0x1c0] sm:$0xff]
    %v183 = vld [vmem:[#allocation2 + $0x1c8] sm:$0xff]
    %v184 = vld [vmem:[#allocation2 + $0x1d0] sm:$0xff]
    %v185 = vld [vmem:[#allocation2 + $0x1d8] sm:$0xff]
    %v186 = vld [vmem:[#allocation2 + $0x1e0] sm:$0xff]
    %v187 = vld [vmem:[#allocation2 + $0x1e8] sm:$0xff]
    %v188 = vld [vmem:[#allocation2 + $0x1f0] sm:$0xff]
    %v189 = vld [vmem:[#allocation2 + $0x1f8] sm:$0xff]
    %vm190 = vweird.f32 %v126
    %vm191 = vweird.f32 %v127
    %vm192 = vweird.f32 %v128
    %vm193 = vweird.f32 %v129
    %vm194 = vweird.f32 %v130
    %vm195 = vweird.f32 %v131
    %vm196 = vweird.f32 %v132
    %vm197 = vweird.f32 %v133
    %vm198 = vweird.f32 %v134
    %vm199 = vweird.f32 %v135
    %vm200 = vweird.f32 %v136
    %vm201 = vweird.f32 %v137
    %vm202 = vweird.f32 %v138
    %vm203 = vweird.f32 %v139
    %vm204 = vweird.f32 %v140
    %vm205 = vweird.f32 %v141
    %vm206 = vweird.f32 %v142
    %vm207 = vweird.f32 %v143
    %vm208 = vweird.f32 %v144
    %vm209 = vweird.f32 %v145
    %vm210 = vweird.f32 %v146
    %vm211 = vweird.f32 %v147
    %vm212 = vweird.f32 %v148
    %vm213 = vweird.f32 %v149
    %vm214 = vweird.f32 %v150
    %vm215 = vweird.f32 %v151
    %vm216 = vweird.f32 %v152
    %vm217 = vweird.f32 %v153
    %vm218 = vweird.f32 %v154
    %vm219 = vweird.f32 %v155
    %vm220 = vweird.f32 %v156
    %vm221 = vweird.f32 %v157
    %vm222 = vweird.f32 %v158
    %vm223 = vweird.f32 %v159
    %vm224 = vweird.f32 %v160
    %vm225 = vweird.f32 %v161
    %vm226 = vweird.f32 %v162
    %vm227 = vweird.f32 %v163
    %vm228 = vweird.f32 %v164
    %vm229 = vweird.f32 %v165
    %vm230 = vweird.f32 %v166
    %vm231 = vweird.f32 %v167
    %vm232 = vweird.f32 %v168
    %vm233 = vweird.f32 %v169
    %vm234 = vweird.f32 %v170
    %vm235 = vweird.f32 %v171
    %vm236 = vweird.f32 %v172
    %vm237 = vweird.f32 %v173
    %vm238 = vweird.f32 %v174
    %vm239 = vweird.f32 %v175
    %vm240 = vweird.f32 %v176
    %vm241 = vweird.f32 %v177
    %vm242 = vweird.f32 %v178
    %vm243 = vweird.f32 %v179
    %vm244 = vweird.f32 %v180
    %vm245 = vweird.f32 %v181
    %vm246 = vweird.f32 %v182
    %vm247 = vweird.f32 %v183
    %vm248 = vweird.f32 %v184
    %vm249 = vweird.f32 %v185
    %vm250 = vweird.f32 %v186
    %vm251 = vweird.f32 %v187
    %vm252 = vweird.f32 %v188
    %vm253 = vweird.f32 %v189
    %v254 = vsel %vm190, 1, 0
    %v255 = vsel %vm191, 1, 0
    %v256 = vsel %vm192, 1, 0
    %v257 = vsel %vm193, 1, 0
    %v258 = vsel %vm194, 1, 0
    %v259 = vsel %vm195, 1, 0
    %v260 = vsel %vm196, 1, 0
    %v261 = vsel %vm197, 1, 0
    %v262 = vsel %vm198, 1, 0
    %v263 = vsel %vm199, 1, 0
    %v264 = vsel %vm200, 1, 0
    %v265 = vsel %vm201, 1, 0
    %v266 = vsel %vm202, 1, 0
    %v267 = vsel %vm203, 1, 0
    %v268 = vsel %vm204, 1, 0
    %v269 = vsel %vm205, 1, 0
    %v270 = vsel %vm206, 1, 0
    %v271 = vsel %vm207, 1, 0
    %v272 = vsel %vm208, 1, 0
    %v273 = vsel %vm209, 1, 0
    %v274 = vsel %vm210, 1, 0
    %v275 = vsel %vm211, 1, 0
    %v276 = vsel %vm212, 1, 0
    %v277 = vsel %vm213, 1, 0
    %v278 = vsel %vm214, 1, 0
    %v279 = vsel %vm215, 1, 0
    %v280 = vsel %vm216, 1, 0
    %v281 = vsel %vm217, 1, 0
    %v282 = vsel %vm218, 1, 0
    %v283 = vsel %vm219, 1, 0
    %v284 = vsel %vm220, 1, 0
    %v285 = vsel %vm221, 1, 0
    %v286 = vsel %vm222, 1, 0
    %v287 = vsel %vm223, 1, 0
    %v288 = vsel %vm224, 1, 0
    %v289 = vsel %vm225, 1, 0
    %v290 = vsel %vm226, 1, 0
    %v291 = vsel %vm227, 1, 0
    %v292 = vsel %vm228, 1, 0
    %v293 = vsel %vm229, 1, 0
    %v294 = vsel %vm230, 1, 0
    %v295 = vsel %vm231, 1, 0
    %v296 = vsel %vm232, 1, 0
    %v297 = vsel %vm233, 1, 0
    %v298 = vsel %vm234, 1, 0
    %v299 = vsel %vm235, 1, 0
    %v300 = vsel %vm236, 1, 0
    %v301 = vsel %vm237, 1, 0
    %v302 = vsel %vm238, 1, 0
    %v303 = vsel %vm239, 1, 0
    %v304 = vsel %vm240, 1, 0
    %v305 = vsel %vm241, 1, 0
    %v306 = vsel %vm242, 1, 0
    %v307 = vsel %vm243, 1, 0
    %v308 = vsel %vm244, 1, 0
    %v309 = vsel %vm245, 1, 0
    %v310 = vsel %vm246, 1, 0
    %v311 = vsel %vm247, 1, 0
    %v312 = vsel %vm248, 1, 0
    %v313 = vsel %vm249, 1, 0
    %v314 = vsel %vm250, 1, 0
    %v315 = vsel %vm251, 1, 0
    %v316 = vsel %vm252, 1, 0
    %v317 = vsel %vm253, 1, 0
    %v318 = vcvt.s32.f32 %v254
    %v319 = vcvt.s32.f32 %v255
    %v320 = vcvt.s32.f32 %v256
    %v321 = vcvt.s32.f32 %v257
    %v322 = vcvt.s32.f32 %v258
    %v323 = vcvt.s32.f32 %v259
    %v324 = vcvt.s32.f32 %v260
    %v325 = vcvt.s32.f32 %v261
    %v326 = vcvt.s32.f32 %v262
    %v327 = vcvt.s32.f32 %v263
    %v328 = vcvt.s32.f32 %v264
    %v329 = vcvt.s32.f32 %v265
    %v330 = vcvt.s32.f32 %v266
    %v331 = vcvt.s32.f32 %v267
    %v332 = vcvt.s32.f32 %v268
    %v333 = vcvt.s32.f32 %v269
    %v334 = vcvt.s32.f32 %v270
    %v335 = vcvt.s32.f32 %v271
    %v336 = vcvt.s32.f32 %v272
    %v337 = vcvt.s32.f32 %v273
    %v338 = vcvt.s32.f32 %v274
    %v339 = vcvt.s32.f32 %v275
    %v340 = vcvt.s32.f32 %v276
    %v341 = vcvt.s32.f32 %v277
    %v342 = vcvt.s32.f32 %v278
    %v343 = vcvt.s32.f32 %v279
    %v344 = vcvt.s32.f32 %v280
    %v345 = vcvt.s32.f32 %v281
    %v346 = vcvt.s32.f32 %v282
    %v347 = vcvt.s32.f32 %v283
    %v348 = vcvt.s32.f32 %v284
    %v349 = vcvt.s32.f32 %v285
    %v350 = vcvt.s32.f32 %v286
    %v351 = vcvt.s32.f32 %v287
    %v352 = vcvt.s32.f32 %v288
    %v353 = vcvt.s32.f32 %v289
    %v354 = vcvt.s32.f32 %v290
    %v355 = vcvt.s32.f32 %v291
    %v356 = vcvt.s32.f32 %v292
    %v357 = vcvt.s32.f32 %v293
    %v358 = vcvt.s32.f32 %v294
    %v359 = vcvt.s32.f32 %v295
    %v360 = vcvt.s32.f32 %v296
    %v361 = vcvt.s32.f32 %v297
    %v362 = vcvt.s32.f32 %v298
    %v363 = vcvt.s32.f32 %v299
    %v364 = vcvt.s32.f32 %v300
    %v365 = vcvt.s32.f32 %v301
    %v366 = vcvt.s32.f32 %v302
    %v367 = vcvt.s32.f32 %v303
    %v368 = vcvt.s32.f32 %v304
    %v369 = vcvt.s32.f32 %v305
    %v370 = vcvt.s32.f32 %v306
    %v371 = vcvt.s32.f32 %v307
    %v372 = vcvt.s32.f32 %v308
    %v373 = vcvt.s32.f32 %v309
    %v374 = vcvt.s32.f32 %v310
    %v375 = vcvt.s32.f32 %v311
    %v376 = vcvt.s32.f32 %v312
    %v377 = vcvt.s32.f32 %v313
    %v378 = vcvt.s32.f32 %v314
    %v379 = vcvt.s32.f32 %v315
    %v380 = vcvt.s32.f32 %v316
    %v381 = vcvt.s32.f32 %v317
    %382 = vmatprep.subr.mxu0 0.0
    %383 = vmatpush1.msra.mxu0 %v109
    %384 = vmatprep.subr.mxu0 0.0
    %385 = vmatpush1.msra.mxu0 %v110
    %386 = vmatprep.subr.mxu0 0.0
    %387 = vmatpush1.msra.mxu0 %v111
    %388 = vmatprep.subr.mxu0 0.0
    %389 = vmatpush1.msra.mxu0 %v112
    %390 = vmatprep.subr.mxu0 0.0
    %391 = vmatpush1.msra.mxu0 %v113
    %392 = vmatprep.subr.mxu0 0.0
    %393 = vmatpush1.msra.mxu0 %v114
    %394 = vmatprep.subr.mxu0 0.0
    %395 = vmatpush1.msra.mxu0 %v115
    %396 = vmatprep.subr.mxu0 0.0
    %397 = vmatpush1.msra.mxu0 %v116
    %398 = vmatprep.subr.mxu0 0.0
    %399 = vmatpush1.msra.mxu0 %v117
    %400 = vmatprep.subr.mxu0 0.0
    %401 = vmatpush1.msra.mxu0 %v118
    %402 = vmatprep.subr.mxu0 0.0
    %403 = vmatpush1.msra.mxu0 %v119
    %404 = vmatprep.subr.mxu0 0.0
    %405 = vmatpush1.msra.mxu0 %v120
    %406 = vmatprep.subr.mxu0 0.0
    %407 = vmatpush1.msra.mxu0 %v121
    %408 = vmatprep.subr.mxu0 0.0
    %409 = vmatpush1.msra.mxu0 %v122
    %410 = vmatprep.subr.mxu0 0.0
    %411 = vmatpush1.msra.mxu0 %v123
    %412 = vmatprep.subr.mxu0 0.0
    %413 = vmatpush1.msra.mxu0 %v124
    %414 = vmatprep.subr.mxu0 0.0
    %415 = vmatpush1.msra.mxu0 0.0
    %416 = vmatprep.subr.mxu0 0.0
    %417 = vmatpush1.msra.mxu0 0.0
    %418 = vmatprep.subr.mxu0 0.0
    %419 = vmatpush1.msra.mxu0 0.0
    %420 = vmatprep.subr.mxu0 0.0
    %421 = vmatpush1.msra.mxu0 0.0
    %422 = vmatprep.subr.mxu0 0.0
    %423 = vmatpush1.msra.mxu0 0.0
    %424 = vmatprep.subr.mxu0 0.0
    %425 = vmatpush1.msra.mxu0 0.0
    %426 = vmatprep.subr.mxu0 0.0
    %427 = vmatpush1.msra.mxu0 0.0
    %428 = vmatprep.subr.mxu0 0.0
    %429 = vmatpush1.msra.mxu0 0.0
    %430 = vmatprep.subr.mxu0 0.0
    %431 = vmatpush1.msra.mxu0 0.0
    %432 = vmatprep.subr.mxu0 0.0
    %433 = vmatpush1.msra.mxu0 0.0
    %434 = vmatprep.subr.mxu0 0.0
    %435 = vmatpush1.msra.mxu0 0.0
    %436 = vmatprep.subr.mxu0 0.0
    %437 = vmatpush1.msra.mxu0 0.0
    %438 = vmatprep.subr.mxu0 0.0
    %439 = vmatpush1.msra.mxu0 0.0
    %440 = vmatprep.subr.mxu0 0.0
    %441 = vmatpush1.msra.mxu0 0.0
    %442 = vmatprep.subr.mxu0 0.0
    %443 = vmatpush1.msra.mxu0 0.0
    %444 = vmatprep.subr.mxu0 0.0
    %445 = vmatpush1.msra.mxu0 0.0
    %446 = vmatprep.mubr.f32.mxu0 0.0
    %447 = vmatmul.mubr.f32.gmra.mrb[0].mxu0 %v318
    %v448 = vpop.f32.mrb[0].mxu0
    %v449 = vadd.f32 0.0, %v448
    %v450 = vpop.f32.mrb[0].mxu0
    %451 = vmatprep.mubr.f32.mxu0 0.0
    %452 = vmatmul.mubr.f32.gmra.mrb[0].mxu0 %v319
    %v453 = vpop.f32.mrb[0].mxu0
    %v454 = vadd.f32 0.0, %v453
    %v455 = vpop.f32.mrb[0].mxu0
    %456 = vmatprep.mubr.f32.mxu0 0.0
    %457 = vmatmul.mubr.f32.gmra.mrb[0].mxu0 %v320
    %v458 = vpop.f32.mrb[0].mxu0
    %v459 = vadd.f32 0.0, %v458
    %v460 = vpop.f32.mrb[0].mxu0
    %461 = vmatprep.mubr.f32.mxu0 0.0
    %462 = vmatmul.mubr.f32.gmra.mrb[0].mxu0 %v321
    %v463 = vpop.f32.mrb[0].mxu0
    %v464 = vadd.f32 0.0, %v463
    %v465 = vpop.f32.mrb[0].mxu0
    %466 = vmatprep.mubr.f32.mxu0 0.0
    %467 = vmatmul.mubr.f32.gmra.mrb[0].mxu0 %v322
    %v468 = vpop.f32.mrb[0].mxu0
    %v469 = vadd.f32 0.0, %v468
    %v470 = vpop.f32.mrb[0].mxu0
    %471 = vmatprep.mubr.f32.mxu0 0.0
    %472 = vmatmul.mubr.f32.gmra.mrb[0].mxu0 %v323
    %v473 = vpop.f32.mrb[0].mxu0
    %v474 = vadd.f32 0.0, %v473
    %v475 = vpop.f32.mrb[0].mxu0
    %476 = vmatprep.mubr.f32.mxu0 0.0
    %477 = vmatmul.mubr.f32.gmra.mrb[0].mxu0 %v324
    %v478 = vpop.f32.mrb[0].mxu0
    %v479 = vadd.f32 0.0, %v478
    %v480 = vpop.f32.mrb[0].mxu0
    %481 = vmatprep.mubr.f32.mxu0 0.0
    %482 = vmatmul.mubr.f32.gmra.mrb[0].mxu0 %v325
    %v483 = vpop.f32.mrb[0].mxu0
    %v484 = vadd.f32 0.0, %v483
    %v485 = vpop.f32.mrb[0].mxu0
    %486 = vmatprep.mubr.f32.mxu0 0.0
    %487 = vmatmul.mubr.f32.gmra.mrb[0].mxu0 %v326
    %v488 = vpop.f32.mrb[0].mxu0
    %v489 = vadd.f32 0.0, %v488
    %v490 = vpop.f32.mrb[0].mxu0
    %491 = vmatprep.mubr.f32.mxu0 0.0
    %492 = vmatmul.mubr.f32.gmra.mrb[0].mxu0 %v327
    %v493 = vpop.f32.mrb[0].mxu0
    %v494 = vadd.f32 0.0, %v493
    %v495 = vpop.f32.mrb[0].mxu0
    %496 = vmatprep.mubr.f32.mxu0 0.0
    %497 = vmatmul.mubr.f32.gmra.mrb[0].mxu0 %v328
    %v498 = vpop.f32.mrb[0].mxu0
    %v499 = vadd.f32 0.0, %v498
    %v500 = vpop.f32.mrb[0].mxu0
    %501 = vmatprep.mubr.f32.mxu0 0.0
    %502 = vmatmul.mubr.f32.gmra.mrb[0].mxu0 %v329
    %v503 = vpop.f32.mrb[0].mxu0
    %v504 = vadd.f32 0.0, %v503
    %v505 = vpop.f32.mrb[0].mxu0
    %506 = vmatprep.mubr.f32.mxu0 0.0
    %507 = vmatmul.mubr.f32.gmra.mrb[0].mxu0 %v330
    %v508 = vpop.f32.mrb[0].mxu0
    %v509 = vadd.f32 0.0, %v508
    %v510 = vpop.f32.mrb[0].mxu0
    %511 = vmatprep.mubr.f32.mxu0 0.0
    %512 = vmatmul.mubr.f32.gmra.mrb[0].mxu0 %v331
    %v513 = vpop.f32.mrb[0].mxu0
    %v514 = vadd.f32 0.0, %v513
    %v515 = vpop.f32.mrb[0].mxu0
    %516 = vmatprep.mubr.f32.mxu0 0.0
    %517 = vmatmul.mubr.f32.gmra.mrb[0].mxu0 %v332
    %v518 = vpop.f32.mrb[0].mxu0
    %v519 = vadd.f32 0.0, %v518
    %v520 = vpop.f32.mrb[0].mxu0
    %521 = vmatprep.mubr.f32.mxu0 0.0
    %522 = vmatmul.mubr.f32.gmra.mrb[0].mxu0 %v333
    %v523 = vpop.f32.mrb[0].mxu0
    %v524 = vadd.f32 0.0, %v523
    %v525 = vpop.f32.mrb[0].mxu0
    %526 = vmatprep.mubr.f32.mxu0 0.0
    %527 = vmatmul.mubr.f32.gmra.mrb[0].mxu0 %v334
    %v528 = vpop.f32.mrb[0].mxu0
    %v529 = vadd.f32 0.0, %v528
    %v530 = vpop.f32.mrb[0].mxu0
    %531 = vmatprep.mubr.f32.mxu0 0.0
    %532 = vmatmul.mubr.f32.gmra.mrb[0].mxu0 %v335
    %v533 = vpop.f32.mrb[0].mxu0
    %v534 = vadd.f32 0.0, %v533
    %v535 = vpop.f32.mrb[0].mxu0
    %536 = vmatprep.mubr.f32.mxu0 0.0
    %537 = vmatmul.mubr.f32.gmra.mrb[0].mxu0 %v336
    %v538 = vpop.f32.mrb[0].mxu0
    %v539 = vadd.f32 0.0, %v538
    %v540 = vpop.f32.mrb[0].mxu0
    %541 = vmatprep.mubr.f32.mxu0 0.0
    %542 = vmatmul.mubr.f32.gmra.mrb[0].mxu0 %v337
    %v543 = vpop.f32.mrb[0].mxu0
    %v544 = vadd.f32 0.0, %v543
    %v545 = vpop.f32.mrb[0].mxu0
    %546 = vmatprep.mubr.f32.mxu0 0.0
    %547 = vmatmul.mubr.f32.gmra.mrb[0].mxu0 %v338
    %v548 = vpop.f32.mrb[0].mxu0
    %v549 = vadd.f32 0.0, %v548
    %v550 = vpop.f32.mrb[0].mxu0
    %551 = vmatprep.mubr.f32.mxu0 0.0
    %552 = vmatmul.mubr.f32.gmra.mrb[0].mxu0 %v339
    %v553 = vpop.f32.mrb[0].mxu0
    %v554 = vadd.f32 0.0, %v553
    %v555 = vpop.f32.mrb[0].mxu0
    %556 = vmatprep.mubr.f32.mxu0 0.0
    %557 = vmatmul.mubr.f32.gmra.mrb[0].mxu0 %v340
    %v558 = vpop.f32.mrb[0].mxu0
    %v559 = vadd.f32 0.0, %v558
    %v560 = vpop.f32.mrb[0].mxu0
    %561 = vmatprep.mubr.f32.mxu0 0.0
    %562 = vmatmul.mubr.f32.gmra.mrb[0].mxu0 %v341
    %v563 = vpop.f32.mrb[0].mxu0
    %v564 = vadd.f32 0.0, %v563
    %v565 = vpop.f32.mrb[0].mxu0
    %566 = vmatprep.mubr.f32.mxu0 0.0
    %567 = vmatmul.mubr.f32.gmra.mrb[0].mxu0 %v342
    %v568 = vpop.f32.mrb[0].mxu0
    %v569 = vadd.f32 0.0, %v568
    %v570 = vpop.f32.mrb[0].mxu0
    %571 = vmatprep.mubr.f32.mxu0 0.0
    %572 = vmatmul.mubr.f32.gmra.mrb[0].mxu0 %v343
    %v573 = vpop.f32.mrb[0].mxu0
    %v574 = vadd.f32 0.0, %v573
    %v575 = vpop.f32.mrb[0].mxu0
    %576 = vmatprep.mubr.f32.mxu0 0.0
    %577 = vmatmul.mubr.f32.gmra.mrb[0].mxu0 %v344
    %v578 = vpop.f32.mrb[0].mxu0
    %v579 = vadd.f32 0.0, %v578
    %v580 = vpop.f32.mrb[0].mxu0
    %581 = vmatprep.mubr.f32.mxu0 0.0
    %582 = vmatmul.mubr.f32.gmra.mrb[0].mxu0 %v345
    %v583 = vpop.f32.mrb[0].mxu0
    %v584 = vadd.f32 0.0, %v583
    %v585 = vpop.f32.mrb[0].mxu0
    %586 = vmatprep.mubr.f32.mxu0 0.0
    %587 = vmatmul.mubr.f32.gmra.mrb[0].mxu0 %v346
    %v588 = vpop.f32.mrb[0].mxu0
    %v589 = vadd.f32 0.0, %v588
    %v590 = vpop.f32.mrb[0].mxu0
    %591 = vmatprep.mubr.f32.mxu0 0.0
    %592 = vmatmul.mubr.f32.gmra.mrb[0].mxu0 %v347
    %v593 = vpop.f32.mrb[0].mxu0
    %v594 = vadd.f32 0.0, %v593
    %v595 = vpop.f32.mrb[0].mxu0
    %596 = vmatprep.mubr.f32.mxu0 0.0
    %597 = vmatmul.mubr.f32.gmra.mrb[0].mxu0 %v348
    %v598 = vpop.f32.mrb[0].mxu0
    %v599 = vadd.f32 0.0, %v598
    %v600 = vpop.f32.mrb[0].mxu0
    %601 = vmatprep.mubr.f32.mxu0 0.0
    %602 = vmatmul.mubr.f32.gmra.mrb[0].mxu0 %v349
    %v603 = vpop.f32.mrb[0].mxu0
    %v604 = vadd.f32 0.0, %v603
    %v605 = vpop.f32.mrb[0].mxu0
    %606 = vmatprep.mubr.f32.mxu0 0.0
    %607 = vmatmul.mubr.f32.gmra.mrb[0].mxu0 %v350
    %v608 = vpop.f32.mrb[0].mxu0
    %v609 = vadd.f32 0.0, %v608
    %v610 = vpop.f32.mrb[0].mxu0
    %611 = vmatprep.mubr.f32.mxu0 0.0
    %612 = vmatmul.mubr.f32.gmra.mrb[0].mxu0 %v351
    %v613 = vpop.f32.mrb[0].mxu0
    %v614 = vadd.f32 0.0, %v613
    %v615 = vpop.f32.mrb[0].mxu0
    %616 = vmatprep.mubr.f32.mxu0 0.0
    %617 = vmatmul.mubr.f32.gmra.mrb[0].mxu0 %v352
    %v618 = vpop.f32.mrb[0].mxu0
    %v619 = vadd.f32 0.0, %v618
    %v620 = vpop.f32.mrb[0].mxu0
    %621 = vmatprep.mubr.f32.mxu0 0.0
    %622 = vmatmul.mubr.f32.gmra.mrb[0].mxu0 %v353
    %v623 = vpop.f32.mrb[0].mxu0
    %v624 = vadd.f32 0.0, %v623
    %v625 = vpop.f32.mrb[0].mxu0
    %626 = vmatprep.mubr.f32.mxu0 0.0
    %627 = vmatmul.mubr.f32.gmra.mrb[0].mxu0 %v354
    %v628 = vpop.f32.mrb[0].mxu0
    %v629 = vadd.f32 0.0, %v628
    %v630 = vpop.f32.mrb[0].mxu0
    %631 = vmatprep.mubr.f32.mxu0 0.0
    %632 = vmatmul.mubr.f32.gmra.mrb[0].mxu0 %v355
    %v633 = vpop.f32.mrb[0].mxu0
    %v634 = vadd.f32 0.0, %v633
    %v635 = vpop.f32.mrb[0].mxu0
    %636 = vmatprep.mubr.f32.mxu0 0.0
    %637 = vmatmul.mubr.f32.gmra.mrb[0].mxu0 %v356
    %v638 = vpop.f32.mrb[0].mxu0
    %v639 = vadd.f32 0.0, %v638
    %v640 = vpop.f32.mrb[0].mxu0
    %641 = vmatprep.mubr.f32.mxu0 0.0
    %642 = vmatmul.mubr.f32.gmra.mrb[0].mxu0 %v357
    %v643 = vpop.f32.mrb[0].mxu0
    %v644 = vadd.f32 0.0, %v643
    %v645 = vpop.f32.mrb[0].mxu0
    %646 = vmatprep.mubr.f32.mxu0 0.0
    %647 = vmatmul.mubr.f32.gmra.mrb[0].mxu0 %v358
    %v648 = vpop.f32.mrb[0].mxu0
    %v649 = vadd.f32 0.0, %v648
    %v650 = vpop.f32.mrb[0].mxu0
    %651 = vmatprep.mubr.f32.mxu0 0.0
    %652 = vmatmul.mubr.f32.gmra.mrb[0].mxu0 %v359
    %v653 = vpop.f32.mrb[0].mxu0
    %v654 = vadd.f32 0.0, %v653
    %v655 = vpop.f32.mrb[0].mxu0
    %656 = vmatprep.mubr.f32.mxu0 0.0
    %657 = vmatmul.mubr.f32.gmra.mrb[0].mxu0 %v360
    %v658 = vpop.f32.mrb[0].mxu0
    %v659 = vadd.f32 0.0, %v658
    %v660 = vpop.f32.mrb[0].mxu0
    %661 = vmatprep.mubr.f32.mxu0 0.0
    %662 = vmatmul.mubr.f32.gmra.mrb[0].mxu0 %v361
    %v663 = vpop.f32.mrb[0].mxu0
    %v664 = vadd.f32 0.0, %v663
    %v665 = vpop.f32.mrb[0].mxu0
    %666 = vmatprep.mubr.f32.mxu0 0.0
    %667 = vmatmul.mubr.f32.gmra.mrb[0].mxu0 %v362
    %v668 = vpop.f32.mrb[0].mxu0
    %v669 = vadd.f32 0.0, %v668
    %v670 = vpop.f32.mrb[0].mxu0
    %671 = vmatprep.mubr.f32.mxu0 0.0
    %672 = vmatmul.mubr.f32.gmra.mrb[0].mxu0 %v363
    %v673 = vpop.f32.mrb[0].mxu0
    %v674 = vadd.f32 0.0, %v673
    %v675 = vpop.f32.mrb[0].mxu0
    %676 = vmatprep.mubr.f32.mxu0 0.0
    %677 = vmatmul.mubr.f32.gmra.mrb[0].mxu0 %v364
    %v678 = vpop.f32.mrb[0].mxu0
    %v679 = vadd.f32 0.0, %v678
    %v680 = vpop.f32.mrb[0].mxu0
    %681 = vmatprep.mubr.f32.mxu0 0.0
    %682 = vmatmul.mubr.f32.gmra.mrb[0].mxu0 %v365
    %v683 = vpop.f32.mrb[0].mxu0
    %v684 = vadd.f32 0.0, %v683
    %v685 = vpop.f32.mrb[0].mxu0
    %686 = vmatprep.mubr.f32.mxu0 0.0
    %687 = vmatmul.mubr.f32.gmra.mrb[0].mxu0 %v366
    %v688 = vpop.f32.mrb[0].mxu0
    %v689 = vadd.f32 0.0, %v688
    %v690 = vpop.f32.mrb[0].mxu0
    %691 = vmatprep.mubr.f32.mxu0 0.0
    %692 = vmatmul.mubr.f32.gmra.mrb[0].mxu0 %v367
    %v693 = vpop.f32.mrb[0].mxu0
    %v694 = vadd.f32 0.0, %v693
    %v695 = vpop.f32.mrb[0].mxu0
    %696 = vmatprep.mubr.f32.mxu0 0.0
    %697 = vmatmul.mubr.f32.gmra.mrb[0].mxu0 %v368
    %v698 = vpop.f32.mrb[0].mxu0
    %v699 = vadd.f32 0.0, %v698
    %v700 = vpop.f32.mrb[0].mxu0
    %701 = vmatprep.mubr.f32.mxu0 0.0
    %702 = vmatmul.mubr.f32.gmra.mrb[0].mxu0 %v369
    %v703 = vpop.f32.mrb[0].mxu0
    %v704 = vadd.f32 0.0, %v703
    %v705 = vpop.f32.mrb[0].mxu0
    %706 = vmatprep.mubr.f32.mxu0 0.0
    %707 = vmatmul.mubr.f32.gmra.mrb[0].mxu0 %v370
    %v708 = vpop.f32.mrb[0].mxu0
    %v709 = vadd.f32 0.0, %v708
    %v710 = vpop.f32.mrb[0].mxu0
    %711 = vmatprep.mubr.f32.mxu0 0.0
    %712 = vmatmul.mubr.f32.gmra.mrb[0].mxu0 %v371
    %v713 = vpop.f32.mrb[0].mxu0
    %v714 = vadd.f32 0.0, %v713
    %v715 = vpop.f32.mrb[0].mxu0
    %716 = vmatprep.mubr.f32.mxu0 0.0
    %717 = vmatmul.mubr.f32.gmra.mrb[0].mxu0 %v372
    %v718 = vpop.f32.mrb[0].mxu0
    %v719 = vadd.f32 0.0, %v718
    %v720 = vpop.f32.mrb[0].mxu0
    %721 = vmatprep.mubr.f32.mxu0 0.0
    %722 = vmatmul.mubr.f32.gmra.mrb[0].mxu0 %v373
    %v723 = vpop.f32.mrb[0].mxu0
    %v724 = vadd.f32 0.0, %v723
    %v725 = vpop.f32.mrb[0].mxu0
    %726 = vmatprep.mubr.f32.mxu0 0.0
    %727 = vmatmul.mubr.f32.gmra.mrb[0].mxu0 %v374
    %v728 = vpop.f32.mrb[0].mxu0
    %v729 = vadd.f32 0.0, %v728
    %v730 = vpop.f32.mrb[0].mxu0
    %731 = vmatprep.mubr.f32.mxu0 0.0
    %732 = vmatmul.mubr.f32.gmra.mrb[0].mxu0 %v375
    %v733 = vpop.f32.mrb[0].mxu0
    %v734 = vadd.f32 0.0, %v733
    %v735 = vpop.f32.mrb[0].mxu0
    %736 = vmatprep.mubr.f32.mxu0 0.0
    %737 = vmatmul.mubr.f32.gmra.mrb[0].mxu0 %v376
    %v738 = vpop.f32.mrb[0].mxu0
    %v739 = vadd.f32 0.0, %v738
    %v740 = vpop.f32.mrb[0].mxu0
    %741 = vmatprep.mubr.f32.mxu0 0.0
    %742 = vmatmul.mubr.f32.gmra.mrb[0].mxu0 %v377
    %v743 = vpop.f32.mrb[0].mxu0
    %v744 = vadd.f32 0.0, %v743
    %v745 = vpop.f32.mrb[0].mxu0
    %746 = vmatprep.mubr.f32.mxu0 0.0
    %747 = vmatmul.mubr.f32.gmra.mrb[0].mxu0 %v378
    %v748 = vpop.f32.mrb[0].mxu0
    %v749 = vadd.f32 0.0, %v748
    %v750 = vpop.f32.mrb[0].mxu0
    %751 = vmatprep.mubr.f32.mxu0 0.0
    %752 = vmatmul.mubr.f32.gmra.mrb[0].mxu0 %v379
    %v753 = vpop.f32.mrb[0].mxu0
    %v754 = vadd.f32 0.0, %v753
    %v755 = vpop.f32.mrb[0].mxu0
    %756 = vmatprep.mubr.f32.mxu0 0.0
    %757 = vmatmul.mubr.f32.gmra.mrb[0].mxu0 %v380
    %v758 = vpop.f32.mrb[0].mxu0
    %v759 = vadd.f32 0.0, %v758
    %v760 = vpop.f32.mrb[0].mxu0
    %761 = vmatprep.mubr.f32.mxu0 0.0
    %762 = vmatmul.mubr.f32.gmra.mrb[0].mxu0 %v381
    %v763 = vpop.f32.mrb[0].mxu0
    %v764 = vadd.f32 0.0, %v763
    %v765 = vpop.f32.mrb[0].mxu0
    %766 = vdwg.mxu0
    %vm767 = vcmp.eq.f32.partialorder %v449, 0.0
    %vm768 = vcmp.eq.f32.partialorder %v454, 0.0
    %vm769 = vcmp.eq.f32.partialorder %v459, 0.0
    %vm770 = vcmp.eq.f32.partialorder %v464, 0.0
    %vm771 = vcmp.eq.f32.partialorder %v469, 0.0
    %vm772 = vcmp.eq.f32.partialorder %v474, 0.0
    %vm773 = vcmp.eq.f32.partialorder %v479, 0.0
    %vm774 = vcmp.eq.f32.partialorder %v484, 0.0
    %vm775 = vcmp.eq.f32.partialorder %v489, 0.0
    %vm776 = vcmp.eq.f32.partialorder %v494, 0.0
    %vm777 = vcmp.eq.f32.partialorder %v499, 0.0
    %vm778 = vcmp.eq.f32.partialorder %v504, 0.0
    %vm779 = vcmp.eq.f32.partialorder %v509, 0.0
    %vm780 = vcmp.eq.f32.partialorder %v514, 0.0
    %vm781 = vcmp.eq.f32.partialorder %v519, 0.0
    %vm782 = vcmp.eq.f32.partialorder %v524, 0.0
    %vm783 = vcmp.eq.f32.partialorder %v529, 0.0
    %vm784 = vcmp.eq.f32.partialorder %v534, 0.0
    %vm785 = vcmp.eq.f32.partialorder %v539, 0.0
    %vm786 = vcmp.eq.f32.partialorder %v544, 0.0
    %vm787 = vcmp.eq.f32.partialorder %v549, 0.0
    %vm788 = vcmp.eq.f32.partialorder %v554, 0.0
    %vm789 = vcmp.eq.f32.partialorder %v559, 0.0
    %vm790 = vcmp.eq.f32.partialorder %v564, 0.0
    %vm791 = vcmp.eq.f32.partialorder %v569, 0.0
    %vm792 = vcmp.eq.f32.partialorder %v574, 0.0
    %vm793 = vcmp.eq.f32.partialorder %v579, 0.0
    %vm794 = vcmp.eq.f32.partialorder %v584, 0.0
    %vm795 = vcmp.eq.f32.partialorder %v589, 0.0
    %vm796 = vcmp.eq.f32.partialorder %v594, 0.0
    %vm797 = vcmp.eq.f32.partialorder %v599, 0.0
    %vm798 = vcmp.eq.f32.partialorder %v604, 0.0
    %vm799 = vcmp.eq.f32.partialorder %v609, 0.0
    %vm800 = vcmp.eq.f32.partialorder %v614, 0.0
    %vm801 = vcmp.eq.f32.partialorder %v619, 0.0
    %vm802 = vcmp.eq.f32.partialorder %v624, 0.0
    %vm803 = vcmp.eq.f32.partialorder %v629, 0.0
    %vm804 = vcmp.eq.f32.partialorder %v634, 0.0
    %vm805 = vcmp.eq.f32.partialorder %v639, 0.0
    %vm806 = vcmp.eq.f32.partialorder %v644, 0.0
    %vm807 = vcmp.eq.f32.partialorder %v649, 0.0
    %vm808 = vcmp.eq.f32.partialorder %v654, 0.0
    %vm809 = vcmp.eq.f32.partialorder %v659, 0.0
    %vm810 = vcmp.eq.f32.partialorder %v664, 0.0
    %vm811 = vcmp.eq.f32.partialorder %v669, 0.0
    %vm812 = vcmp.eq.f32.partialorder %v674, 0.0
    %vm813 = vcmp.eq.f32.partialorder %v679, 0.0
    %vm814 = vcmp.eq.f32.partialorder %v684, 0.0
    %vm815 = vcmp.eq.f32.partialorder %v689, 0.0
    %vm816 = vcmp.eq.f32.partialorder %v694, 0.0
    %vm817 = vcmp.eq.f32.partialorder %v699, 0.0
    %vm818 = vcmp.eq.f32.partialorder %v704, 0.0
    %vm819 = vcmp.eq.f32.partialorder %v709, 0.0
    %vm820 = vcmp.eq.f32.partialorder %v714, 0.0
    %vm821 = vcmp.eq.f32.partialorder %v719, 0.0
    %vm822 = vcmp.eq.f32.partialorder %v724, 0.0
    %vm823 = vcmp.eq.f32.partialorder %v729, 0.0
    %vm824 = vcmp.eq.f32.partialorder %v734, 0.0
    %vm825 = vcmp.eq.f32.partialorder %v739, 0.0
    %vm826 = vcmp.eq.f32.partialorder %v744, 0.0
    %vm827 = vcmp.eq.f32.partialorder %v749, 0.0
    %vm828 = vcmp.eq.f32.partialorder %v754, 0.0
    %vm829 = vcmp.eq.f32.partialorder %v759, 0.0
    %vm830 = vcmp.eq.f32.partialorder %v764, 0.0
    %vm831 = vmand %vm767, %vm125
    %vm832 = vmand %vm768, %vm125
    %vm833 = vmand %vm769, %vm125
    %vm834 = vmand %vm770, %vm125
    %vm835 = vmand %vm771, %vm125
    %vm836 = vmand %vm772, %vm125
    %vm837 = vmand %vm773, %vm125
    %vm838 = vmand %vm774, %vm125
    %vm839 = vmand %vm775, %vm125
    %vm840 = vmand %vm776, %vm125
    %vm841 = vmand %vm777, %vm125
    %vm842 = vmand %vm778, %vm125
    %vm843 = vmand %vm779, %vm125
    %vm844 = vmand %vm780, %vm125
    %vm845 = vmand %vm781, %vm125
    %vm846 = vmand %vm782, %vm125
    %vm847 = vmand %vm783, %vm125
    %vm848 = vmand %vm784, %vm125
    %vm849 = vmand %vm785, %vm125
    %vm850 = vmand %vm786, %vm125
    %vm851 = vmand %vm787, %vm125
    %vm852 = vmand %vm788, %vm125
    %vm853 = vmand %vm789, %vm125
    %vm854 = vmand %vm790, %vm125
    %vm855 = vmand %vm791, %vm125
    %vm856 = vmand %vm792, %vm125
    %vm857 = vmand %vm793, %vm125
    %vm858 = vmand %vm794, %vm125
    %vm859 = vmand %vm795, %vm125
    %vm860 = vmand %vm796, %vm125
    %vm861 = vmand %vm797, %vm125
    %vm862 = vmand %vm798, %vm125
    %vm863 = vmand %vm799, %vm125
    %vm864 = vmand %vm800, %vm125
    %vm865 = vmand %vm801, %vm125
    %vm866 = vmand %vm802, %vm125
    %vm867 = vmand %vm803, %vm125
    %vm868 = vmand %vm804, %vm125
    %vm869 = vmand %vm805, %vm125
    %vm870 = vmand %vm806, %vm125
    %vm871 = vmand %vm807, %vm125
    %vm872 = vmand %vm808, %vm125
    %vm873 = vmand %vm809, %vm125
    %vm874 = vmand %vm810, %vm125
    %vm875 = vmand %vm811, %vm125
    %vm876 = vmand %vm812, %vm125
    %vm877 = vmand %vm813, %vm125
    %vm878 = vmand %vm814, %vm125
    %vm879 = vmand %vm815, %vm125
    %vm880 = vmand %vm816, %vm125
    %vm881 = vmand %vm817, %vm125
    %vm882 = vmand %vm818, %vm125
    %vm883 = vmand %vm819, %vm125
    %vm884 = vmand %vm820, %vm125
    %vm885 = vmand %vm821, %vm125
    %vm886 = vmand %vm822, %vm125
    %vm887 = vmand %vm823, %vm125
    %vm888 = vmand %vm824, %vm125
    %vm889 = vmand %vm825, %vm125
    %vm890 = vmand %vm826, %vm125
    %vm891 = vmand %vm827, %vm125
    %vm892 = vmand %vm828, %vm125
    %vm893 = vmand %vm829, %vm125
    %vm894 = vmand %vm830, %vm125
    %v895 = vadd.s32 %v24, 128
    %v896 = vadd.s32 %v24, 136
    %v897 = vadd.s32 %v24, 144
    %v898 = vadd.s32 %v24, 152
    %v899 = vadd.s32 %v24, 160
    %v900 = vadd.s32 %v24, 168
    %v901 = vadd.s32 %v24, 176
    %v902 = vadd.s32 %v24, 184
    %v903 = vadd.s32 %v24, 192
    %v904 = vadd.s32 %v24, 200
    %v905 = vadd.s32 %v24, 208
    %v906 = vadd.s32 %v24, 216
    %v907 = vadd.s32 %v24, 224
    %v908 = vadd.s32 %v24, 232
    %v909 = vadd.s32 %v24, 240
    %v910 = vadd.s32 %v24, 248
    %v911 = vadd.s32 %v24, 256
    %v912 = vadd.s32 %v24, 264
    %v913 = vadd.s32 %v24, 272
    %v914 = vadd.s32 %v24, 280
    %v915 = vadd.s32 %v24, 288
    %v916 = vadd.s32 %v24, 296
    %v917 = vadd.s32 %v24, 304
    %v918 = vadd.s32 %v24, 312
    %v919 = vadd.s32 %v24, 320
    %v920 = vadd.s32 %v24, 328
    %v921 = vadd.s32 %v24, 336
    %v922 = vadd.s32 %v24, 344
    %v923 = vadd.s32 %v24, 352
    %v924 = vadd.s32 %v24, 360
    %v925 = vadd.s32 %v24, 368
    %v926 = vadd.s32 %v24, 376
    %v927 = vadd.s32 %v24, 384
    %v928 = vadd.s32 %v24, 392
    %v929 = vadd.s32 %v24, 400
    %v930 = vadd.s32 %v24, 408
    %v931 = vadd.s32 %v24, 416
    %v932 = vadd.s32 %v24, 424
    %v933 = vadd.s32 %v24, 432
    %v934 = vadd.s32 %v24, 440
    %v935 = vadd.s32 %v24, 448
    %v936 = vadd.s32 %v24, 456
    %v937 = vadd.s32 %v24, 464
    %v938 = vadd.s32 %v24, 472
    %v939 = vadd.s32 %v24, 480
    %v940 = vadd.s32 %v24, 488
    %v941 = vadd.s32 %v24, 496
    %v942 = vadd.s32 %v24, 504
    %s943 = smul.u32 0, 512
    %v944 = vstv %s943
    %v945 = vadd.s32 %v24, %v944
    %v946 = vadd.s32 %v25, %v944
    %v947 = vadd.s32 %v26, %v944
    %v948 = vadd.s32 %v27, %v944
    %v949 = vadd.s32 %v28, %v944
    %v950 = vadd.s32 %v29, %v944
    %v951 = vadd.s32 %v30, %v944
    %v952 = vadd.s32 %v31, %v944
    %v953 = vadd.s32 %v32, %v944
    %v954 = vadd.s32 %v33, %v944
    %v955 = vadd.s32 %v34, %v944
    %v956 = vadd.s32 %v35, %v944
    %v957 = vadd.s32 %v36, %v944
    %v958 = vadd.s32 %v37, %v944
    %v959 = vadd.s32 %v38, %v944
    %v960 = vadd.s32 %v39, %v944
    %v961 = vadd.s32 %v895, %v944
    %v962 = vadd.s32 %v896, %v944
    %v963 = vadd.s32 %v897, %v944
    %v964 = vadd.s32 %v898, %v944
    %v965 = vadd.s32 %v899, %v944
    %v966 = vadd.s32 %v900, %v944
    %v967 = vadd.s32 %v901, %v944
    %v968 = vadd.s32 %v902, %v944
    %v969 = vadd.s32 %v903, %v944
    %v970 = vadd.s32 %v904, %v944
    %v971 = vadd.s32 %v905, %v944
    %v972 = vadd.s32 %v906, %v944
    %v973 = vadd.s32 %v907, %v944
    %v974 = vadd.s32 %v908, %v944
    %v975 = vadd.s32 %v909, %v944
    %v976 = vadd.s32 %v910, %v944
    %v977 = vadd.s32 %v911, %v944
    %v978 = vadd.s32 %v912, %v944
    %v979 = vadd.s32 %v913, %v944
    %v980 = vadd.s32 %v914, %v944
    %v981 = vadd.s32 %v915, %v944
    %v982 = vadd.s32 %v916, %v944
    %v983 = vadd.s32 %v917, %v944
    %v984 = vadd.s32 %v918, %v944
    %v985 = vadd.s32 %v919, %v944
    %v986 = vadd.s32 %v920, %v944
    %v987 = vadd.s32 %v921, %v944
    %v988 = vadd.s32 %v922, %v944
    %v989 = vadd.s32 %v923, %v944
    %v990 = vadd.s32 %v924, %v944
    %v991 = vadd.s32 %v925, %v944
    %v992 = vadd.s32 %v926, %v944
    %v993 = vadd.s32 %v927, %v944
    %v994 = vadd.s32 %v928, %v944
    %v995 = vadd.s32 %v929, %v944
    %v996 = vadd.s32 %v930, %v944
    %v997 = vadd.s32 %v931, %v944
    %v998 = vadd.s32 %v932, %v944
    %v999 = vadd.s32 %v933, %v944
    %v1000 = vadd.s32 %v934, %v944
    %v1001 = vadd.s32 %v935, %v944
    %v1002 = vadd.s32 %v936, %v944
    %v1003 = vadd.s32 %v937, %v944
    %v1004 = vadd.s32 %v938, %v944
    %v1005 = vadd.s32 %v939, %v944
    %v1006 = vadd.s32 %v940, %v944
    %v1007 = vadd.s32 %v941, %v944
    %v1008 = vadd.s32 %v942, %v944
    %v1009 = vstv 0
    %v1010 = vadd.s32 %v945, %v1009
    %v1011 = vadd.s32 %v946, %v1009
    %v1012 = vadd.s32 %v947, %v1009
    %v1013 = vadd.s32 %v948, %v1009
    %v1014 = vadd.s32 %v949, %v1009
    %v1015 = vadd.s32 %v950, %v1009
    %v1016 = vadd.s32 %v951, %v1009
    %v1017 = vadd.s32 %v952, %v1009
    %v1018 = vadd.s32 %v953, %v1009
    %v1019 = vadd.s32 %v954, %v1009
    %v1020 = vadd.s32 %v955, %v1009
    %v1021 = vadd.s32 %v956, %v1009
    %v1022 = vadd.s32 %v957, %v1009
    %v1023 = vadd.s32 %v958, %v1009
    %v1024 = vadd.s32 %v959, %v1009
    %v1025 = vadd.s32 %v960, %v1009
    %v1026 = vadd.s32 %v961, %v1009
    %v1027 = vadd.s32 %v962, %v1009
    %v1028 = vadd.s32 %v963, %v1009
    %v1029 = vadd.s32 %v964, %v1009
    %v1030 = vadd.s32 %v965, %v1009
    %v1031 = vadd.s32 %v966, %v1009
    %v1032 = vadd.s32 %v967, %v1009
    %v1033 = vadd.s32 %v968, %v1009
    %v1034 = vadd.s32 %v969, %v1009
    %v1035 = vadd.s32 %v970, %v1009
    %v1036 = vadd.s32 %v971, %v1009
    %v1037 = vadd.s32 %v972, %v1009
    %v1038 = vadd.s32 %v973, %v1009
    %v1039 = vadd.s32 %v974, %v1009
    %v1040 = vadd.s32 %v975, %v1009
    %v1041 = vadd.s32 %v976, %v1009
    %v1042 = vadd.s32 %v977, %v1009
    %v1043 = vadd.s32 %v978, %v1009
    %v1044 = vadd.s32 %v979, %v1009
    %v1045 = vadd.s32 %v980, %v1009
    %v1046 = vadd.s32 %v981, %v1009
    %v1047 = vadd.s32 %v982, %v1009
    %v1048 = vadd.s32 %v983, %v1009
    %v1049 = vadd.s32 %v984, %v1009
    %v1050 = vadd.s32 %v985, %v1009
    %v1051 = vadd.s32 %v986, %v1009
    %v1052 = vadd.s32 %v987, %v1009
    %v1053 = vadd.s32 %v988, %v1009
    %v1054 = vadd.s32 %v989, %v1009
    %v1055 = vadd.s32 %v990, %v1009
    %v1056 = vadd.s32 %v991, %v1009
    %v1057 = vadd.s32 %v992, %v1009
    %v1058 = vadd.s32 %v993, %v1009
    %v1059 = vadd.s32 %v994, %v1009
    %v1060 = vadd.s32 %v995, %v1009
    %v1061 = vadd.s32 %v996, %v1009
    %v1062 = vadd.s32 %v997, %v1009
    %v1063 = vadd.s32 %v998, %v1009
    %v1064 = vadd.s32 %v999, %v1009
    %v1065 = vadd.s32 %v1000, %v1009
    %v1066 = vadd.s32 %v1001, %v1009
    %v1067 = vadd.s32 %v1002, %v1009
    %v1068 = vadd.s32 %v1003, %v1009
    %v1069 = vadd.s32 %v1004, %v1009
    %v1070 = vadd.s32 %v1005, %v1009
    %v1071 = vadd.s32 %v1006, %v1009
    %v1072 = vadd.s32 %v1007, %v1009
    %v1073 = vadd.s32 %v1008, %v1009
    %vm1074 = vcmp.lt.s32.totalorder %v1010, 16
    %vm1075 = vcmp.lt.s32.totalorder %v1011, 16
    %vm1076 = vcmp.lt.s32.totalorder %v1012, 16
    %vm1077 = vcmp.lt.s32.totalorder %v1013, 16
    %vm1078 = vcmp.lt.s32.totalorder %v1014, 16
    %vm1079 = vcmp.lt.s32.totalorder %v1015, 16
    %vm1080 = vcmp.lt.s32.totalorder %v1016, 16
    %vm1081 = vcmp.lt.s32.totalorder %v1017, 16
    %vm1082 = vcmp.lt.s32.totalorder %v1018, 16
    %vm1083 = vcmp.lt.s32.totalorder %v1019, 16
    %vm1084 = vcmp.lt.s32.totalorder %v1020, 16
    %vm1085 = vcmp.lt.s32.totalorder %v1021, 16
    %vm1086 = vcmp.lt.s32.totalorder %v1022, 16
    %vm1087 = vcmp.lt.s32.totalorder %v1023, 16
    %vm1088 = vcmp.lt.s32.totalorder %v1024, 16
    %vm1089 = vcmp.lt.s32.totalorder %v1025, 16
    %vm1090 = vcmp.lt.s32.totalorder %v1026, 16
    %vm1091 = vcmp.lt.s32.totalorder %v1027, 16
    %vm1092 = vcmp.lt.s32.totalorder %v1028, 16
    %vm1093 = vcmp.lt.s32.totalorder %v1029, 16
    %vm1094 = vcmp.lt.s32.totalorder %v1030, 16
    %vm1095 = vcmp.lt.s32.totalorder %v1031, 16
    %vm1096 = vcmp.lt.s32.totalorder %v1032, 16
    %vm1097 = vcmp.lt.s32.totalorder %v1033, 16
    %vm1098 = vcmp.lt.s32.totalorder %v1034, 16
    %vm1099 = vcmp.lt.s32.totalorder %v1035, 16
    %vm1100 = vcmp.lt.s32.totalorder %v1036, 16
    %vm1101 = vcmp.lt.s32.totalorder %v1037, 16
    %vm1102 = vcmp.lt.s32.totalorder %v1038, 16
    %vm1103 = vcmp.lt.s32.totalorder %v1039, 16
    %vm1104 = vcmp.lt.s32.totalorder %v1040, 16
    %vm1105 = vcmp.lt.s32.totalorder %v1041, 16
    %vm1106 = vcmp.lt.s32.totalorder %v1042, 16
    %vm1107 = vcmp.lt.s32.totalorder %v1043, 16
    %vm1108 = vcmp.lt.s32.totalorder %v1044, 16
    %vm1109 = vcmp.lt.s32.totalorder %v1045, 16
    %vm1110 = vcmp.lt.s32.totalorder %v1046, 16
    %vm1111 = vcmp.lt.s32.totalorder %v1047, 16
    %vm1112 = vcmp.lt.s32.totalorder %v1048, 16
    %vm1113 = vcmp.lt.s32.totalorder %v1049, 16
    %vm1114 = vcmp.lt.s32.totalorder %v1050, 16
    %vm1115 = vcmp.lt.s32.totalorder %v1051, 16
    %vm1116 = vcmp.lt.s32.totalorder %v1052, 16
    %vm1117 = vcmp.lt.s32.totalorder %v1053, 16
    %vm1118 = vcmp.lt.s32.totalorder %v1054, 16
    %vm1119 = vcmp.lt.s32.totalorder %v1055, 16
    %vm1120 = vcmp.lt.s32.totalorder %v1056, 16
    %vm1121 = vcmp.lt.s32.totalorder %v1057, 16
    %vm1122 = vcmp.lt.s32.totalorder %v1058, 16
    %vm1123 = vcmp.lt.s32.totalorder %v1059, 16
    %vm1124 = vcmp.lt.s32.totalorder %v1060, 16
    %vm1125 = vcmp.lt.s32.totalorder %v1061, 16
    %vm1126 = vcmp.lt.s32.totalorder %v1062, 16
    %vm1127 = vcmp.lt.s32.totalorder %v1063, 16
    %vm1128 = vcmp.lt.s32.totalorder %v1064, 16
    %vm1129 = vcmp.lt.s32.totalorder %v1065, 16
    %vm1130 = vcmp.lt.s32.totalorder %v1066, 16
    %vm1131 = vcmp.lt.s32.totalorder %v1067, 16
    %vm1132 = vcmp.lt.s32.totalorder %v1068, 16
    %vm1133 = vcmp.lt.s32.totalorder %v1069, 16
    %vm1134 = vcmp.lt.s32.totalorder %v1070, 16
    %vm1135 = vcmp.lt.s32.totalorder %v1071, 16
    %vm1136 = vcmp.lt.s32.totalorder %v1072, 16
    %vm1137 = vcmp.lt.s32.totalorder %v1073, 16
    %vm1138 = vmand %vm831, %vm1074
    %vm1139 = vmand %vm832, %vm1075
    %vm1140 = vmand %vm833, %vm1076
    %vm1141 = vmand %vm834, %vm1077
    %vm1142 = vmand %vm835, %vm1078
    %vm1143 = vmand %vm836, %vm1079
    %vm1144 = vmand %vm837, %vm1080
    %vm1145 = vmand %vm838, %vm1081
    %vm1146 = vmand %vm839, %vm1082
    %vm1147 = vmand %vm840, %vm1083
    %vm1148 = vmand %vm841, %vm1084
    %vm1149 = vmand %vm842, %vm1085
    %vm1150 = vmand %vm843, %vm1086
    %vm1151 = vmand %vm844, %vm1087
    %vm1152 = vmand %vm845, %vm1088
    %vm1153 = vmand %vm846, %vm1089
    %vm1154 = vmand %vm847, %vm1090
    %vm1155 = vmand %vm848, %vm1091
    %vm1156 = vmand %vm849, %vm1092
    %vm1157 = vmand %vm850, %vm1093
    %vm1158 = vmand %vm851, %vm1094
    %vm1159 = vmand %vm852, %vm1095
    %vm1160 = vmand %vm853, %vm1096
    %vm1161 = vmand %vm854, %vm1097
    %vm1162 = vmand %vm855, %vm1098
    %vm1163 = vmand %vm856, %vm1099
    %vm1164 = vmand %vm857, %vm1100
    %vm1165 = vmand %vm858, %vm1101
    %vm1166 = vmand %vm859, %vm1102
    %vm1167 = vmand %vm860, %vm1103
    %vm1168 = vmand %vm861, %vm1104
    %vm1169 = vmand %vm862, %vm1105
    %vm1170 = vmand %vm863, %vm1106
    %vm1171 = vmand %vm864, %vm1107
    %vm1172 = vmand %vm865, %vm1108
    %vm1173 = vmand %vm866, %vm1109
    %vm1174 = vmand %vm867, %vm1110
    %vm1175 = vmand %vm868, %vm1111
    %vm1176 = vmand %vm869, %vm1112
    %vm1177 = vmand %vm870, %vm1113
    %vm1178 = vmand %vm871, %vm1114
    %vm1179 = vmand %vm872, %vm1115
    %vm1180 = vmand %vm873, %vm1116
    %vm1181 = vmand %vm874, %vm1117
    %vm1182 = vmand %vm875, %vm1118
    %vm1183 = vmand %vm876, %vm1119
    %vm1184 = vmand %vm877, %vm1120
    %vm1185 = vmand %vm878, %vm1121
    %vm1186 = vmand %vm879, %vm1122
    %vm1187 = vmand %vm880, %vm1123
    %vm1188 = vmand %vm881, %vm1124
    %vm1189 = vmand %vm882, %vm1125
    %vm1190 = vmand %vm883, %vm1126
    %vm1191 = vmand %vm884, %vm1127
    %vm1192 = vmand %vm885, %vm1128
    %vm1193 = vmand %vm886, %vm1129
    %vm1194 = vmand %vm887, %vm1130
    %vm1195 = vmand %vm888, %vm1131
    %vm1196 = vmand %vm889, %vm1132
    %vm1197 = vmand %vm890, %vm1133
    %vm1198 = vmand %vm891, %vm1134
    %vm1199 = vmand %vm892, %vm1135
    %vm1200 = vmand %vm893, %vm1136
    %vm1201 = vmand %vm894, %vm1137
    %v1202 = vsel %vm1138, 1, 0
    %v1203 = vsel %vm1139, 1, 0
    %v1204 = vsel %vm1140, 1, 0
    %v1205 = vsel %vm1141, 1, 0
    %v1206 = vsel %vm1142, 1, 0
    %v1207 = vsel %vm1143, 1, 0
    %v1208 = vsel %vm1144, 1, 0
    %v1209 = vsel %vm1145, 1, 0
    %v1210 = vsel %vm1146, 1, 0
    %v1211 = vsel %vm1147, 1, 0
    %v1212 = vsel %vm1148, 1, 0
    %v1213 = vsel %vm1149, 1, 0
    %v1214 = vsel %vm1150, 1, 0
    %v1215 = vsel %vm1151, 1, 0
    %v1216 = vsel %vm1152, 1, 0
    %v1217 = vsel %vm1153, 1, 0
    %v1218 = vsel %vm1154, 1, 0
    %v1219 = vsel %vm1155, 1, 0
    %v1220 = vsel %vm1156, 1, 0
    %v1221 = vsel %vm1157, 1, 0
    %v1222 = vsel %vm1158, 1, 0
    %v1223 = vsel %vm1159, 1, 0
    %v1224 = vsel %vm1160, 1, 0
    %v1225 = vsel %vm1161, 1, 0
    %v1226 = vsel %vm1162, 1, 0
    %v1227 = vsel %vm1163, 1, 0
    %v1228 = vsel %vm1164, 1, 0
    %v1229 = vsel %vm1165, 1, 0
    %v1230 = vsel %vm1166, 1, 0
    %v1231 = vsel %vm1167, 1, 0
    %v1232 = vsel %vm1168, 1, 0
    %v1233 = vsel %vm1169, 1, 0
    %v1234 = vsel %vm1170, 1, 0
    %v1235 = vsel %vm1171, 1, 0
    %v1236 = vsel %vm1172, 1, 0
    %v1237 = vsel %vm1173, 1, 0
    %v1238 = vsel %vm1174, 1, 0
    %v1239 = vsel %vm1175, 1, 0
    %v1240 = vsel %vm1176, 1, 0
    %v1241 = vsel %vm1177, 1, 0
    %v1242 = vsel %vm1178, 1, 0
    %v1243 = vsel %vm1179, 1, 0
    %v1244 = vsel %vm1180, 1, 0
    %v1245 = vsel %vm1181, 1, 0
    %v1246 = vsel %vm1182, 1, 0
    %v1247 = vsel %vm1183, 1, 0
    %v1248 = vsel %vm1184, 1, 0
    %v1249 = vsel %vm1185, 1, 0
    %v1250 = vsel %vm1186, 1, 0
    %v1251 = vsel %vm1187, 1, 0
    %v1252 = vsel %vm1188, 1, 0
    %v1253 = vsel %vm1189, 1, 0
    %v1254 = vsel %vm1190, 1, 0
    %v1255 = vsel %vm1191, 1, 0
    %v1256 = vsel %vm1192, 1, 0
    %v1257 = vsel %vm1193, 1, 0
    %v1258 = vsel %vm1194, 1, 0
    %v1259 = vsel %vm1195, 1, 0
    %v1260 = vsel %vm1196, 1, 0
    %v1261 = vsel %vm1197, 1, 0
    %v1262 = vsel %vm1198, 1, 0
    %v1263 = vsel %vm1199, 1, 0
    %v1264 = vsel %vm1200, 1, 0
    %v1265 = vsel %vm1201, 1, 0
    %v1266 = vadd.s32 %v1202, %v1206
    %v1267 = vadd.s32 %v1203, %v1207
    %v1268 = vadd.s32 %v1204, %v1208
    %v1269 = vadd.s32 %v1205, %v1209
    %v1270 = vadd.s32 %v1266, %v1210
    %v1271 = vadd.s32 %v1267, %v1211
    %v1272 = vadd.s32 %v1268, %v1212
    %v1273 = vadd.s32 %v1269, %v1213
    %v1274 = vadd.s32 %v1270, %v1214
    %v1275 = vadd.s32 %v1271, %v1215
    %v1276 = vadd.s32 %v1272, %v1216
    %v1277 = vadd.s32 %v1273, %v1217
    %v1278 = vadd.s32 %v1274, %v1218
    %v1279 = vadd.s32 %v1275, %v1219
    %v1280 = vadd.s32 %v1276, %v1220
    %v1281 = vadd.s32 %v1277, %v1221
    %v1282 = vadd.s32 %v1278, %v1222
    %v1283 = vadd.s32 %v1279, %v1223
    %v1284 = vadd.s32 %v1280, %v1224
    %v1285 = vadd.s32 %v1281, %v1225
    %v1286 = vadd.s32 %v1282, %v1226
    %v1287 = vadd.s32 %v1283, %v1227
    %v1288 = vadd.s32 %v1284, %v1228
    %v1289 = vadd.s32 %v1285, %v1229
    %v1290 = vadd.s32 %v1286, %v1230
    %v1291 = vadd.s32 %v1287, %v1231
    %v1292 = vadd.s32 %v1288, %v1232
    %v1293 = vadd.s32 %v1289, %v1233
    %v1294 = vadd.s32 %v1290, %v1234
    %v1295 = vadd.s32 %v1291, %v1235
    %v1296 = vadd.s32 %v1292, %v1236
    %v1297 = vadd.s32 %v1293, %v1237
    %v1298 = vadd.s32 %v1294, %v1238
    %v1299 = vadd.s32 %v1295, %v1239
    %v1300 = vadd.s32 %v1296, %v1240
    %v1301 = vadd.s32 %v1297, %v1241
    %v1302 = vadd.s32 %v1298, %v1242
    %v1303 = vadd.s32 %v1299, %v1243
    %v1304 = vadd.s32 %v1300, %v1244
    %v1305 = vadd.s32 %v1301, %v1245
    %v1306 = vadd.s32 %v1302, %v1246
    %v1307 = vadd.s32 %v1303, %v1247
    %v1308 = vadd.s32 %v1304, %v1248
    %v1309 = vadd.s32 %v1305, %v1249
    %v1310 = vadd.s32 %v1306, %v1250
    %v1311 = vadd.s32 %v1307, %v1251
    %v1312 = vadd.s32 %v1308, %v1252
    %v1313 = vadd.s32 %v1309, %v1253
    %v1314 = vadd.s32 %v1310, %v1254
    %v1315 = vadd.s32 %v1311, %v1255
    %v1316 = vadd.s32 %v1312, %v1256
    %v1317 = vadd.s32 %v1313, %v1257
    %v1318 = vadd.s32 %v1314, %v1258
    %v1319 = vadd.s32 %v1315, %v1259
    %v1320 = vadd.s32 %v1316, %v1260
    %v1321 = vadd.s32 %v1317, %v1261
    %v1322 = vadd.s32 %v1318, %v1262
    %v1323 = vadd.s32 %v1319, %v1263
    %v1324 = vadd.s32 %v1320, %v1264
    %v1325 = vadd.s32 %v1321, %v1265
    %v1326 = vadd.s32 %v1322, %v1323
    %v1327 = vadd.s32 %v1324, %v1325
    %v1328 = vadd.s32 %v1326, %v1327
    %v1329 = vand.u32 %v1328, 65535
    %v1330 = vshrl.u32 %v1328, 16
    %v1331 = vcvt.s32.f32 %v1329
    %v1332 = vcvt.s32.f32 %v1330
    %1333 = vadd.xlane.f32.xlu0 %v1331
    %v1334 = vpop.xlane.xlu0 %1333
    %1335 = vadd.xlane.f32.xlu0 %v1332
    %v1336 = vpop.xlane.xlu0 %1335
    %v1337 = vcvt.f32.s32 %v1334
    %v1338 = vcvt.f32.s32 %v1336
    %v1339 = vshll.u32 %v1338, 16
    %v1340 = vadd.s32 %v1339, %v1337
    %v1341 = vrot.slane %v1340, 4
    %v1342 = vadd.s32 %v1340, %v1341
    %v1343 = vrot.slane %v1342, 2
    %v1344 = vadd.s32 %v1342, %v1343
    %v1345 = vrot.slane %v1344, 1
    %v1346 = vadd.s32 %v1344, %v1345
    %s1347 = vtos %v1346
    %v1348 = vstv %s1347
    %1349 = vst [vmem:[#allocation5] sm:$0xff] %v1348
    // Predicated region
    $region10: #{tpu_custom_call.1} parent=1 // pred_check
      _
    $region11: #{tpu_custom_call.1} parent=1 // pred_check_branch
      %1351 = sbr.rel (0) target = $region13
    $region12: #{tpu_custom_call.1} parent=1 // pred_region
      %s1353 = ssub.s32 128, 128
      %1354 = vsyncadd [#allocation4], %s1353
      %s1356 = sshll.u32 [#allocation5], 4
      %s1357 = int_to_ptr.vmem [resolvable:$true] %s1356
      %1359 = dma.vmem_to_hbm [thread:$0]  %s1357, 128, %s1, [#allocation4]
    $region13: #{tpu_custom_call.1} parent=1 // pred_fallthru
      _
    // Predicated region
    $region14: #{tpu_custom_call.1} parent=1 // pred_check
      _
    $region15: #{tpu_custom_call.1} parent=1 // pred_check_branch
      %1361 = sbr.rel (0) target = $region17
    $region16: #{tpu_custom_call.1} parent=1 // pred_region
      %1362 = dma.done [#allocation4], 128
    $region17: #{tpu_custom_call.1} parent=1 // pred_fallthru
      _
    %1363 = vsyncpa [#allocation3], 1
    %1364 = vsyncpa [#allocation4], 1

</llo_original>
